<compile_context>
chip_gen: v7x
topology: tpu7x:2x2x1
jax: 0.10.0
libtpu: 0.0.40
codegen_flags: <defaults>
</compile_context>

<pallas_src>
import jax
import jax.numpy as jnp
from jax.experimental import pallas as pl
from jax.experimental.pallas import tpu as pltpu  # noqa: F401  (not needed at these sizes)


# ----------------------------------------------------------------------------- kernel
def _bdgcnm_kernel(x_ref, m_ref, d_ref, w_ref, b_ref, o_ref):
    """Whole bidirectional pass in one invocation.

    x_ref : (q, B, N, C) data
    m_ref : (q, B, N, C) mask_missing
    d_ref : (R, 2C)      [diag(adjfor)[N:] | diag(adjbac)[N:]] per-(b, n) row scales
    w_ref : (q, 2C, 4C)  step-i block-diag weights, columns laid out as
                         [Wf_lhs[i] | Wb_lhs[q-1-i] | Wf_rhs[i] | Wb_rhs[q-1-i]];
                         x-rows feed only forward columns, h-rows only backward ones
    b_ref : (q, 1, 4C)   matching fused biases
    o_ref : (B, q, N, C) output
    """
    q, B, N, C = x_ref.shape
    R = B * N
    C2 = 2 * C

    x_all = x_ref[...].reshape(q, R, C)          # tile-aligned (N % 8 == 0): free
    m_all = m_ref[...].reshape(q, R, C)
    d = d_ref[...]                               # (R, 2C)

    # h0 = sum(mask)/sum(data) over time, NaN -> mean(data).  Matches torch.isnan
    # semantics (infs pass through).  Fused here instead of wrapper-side XLA glue.
    fill = jnp.mean(x_all)
    h = jnp.sum(m_all, axis=0) / jnp.sum(x_all, axis=0)
    h = jnp.where(jnp.isnan(h), fill, h)         # (R, C) backward recurrence state

    # q is small and static -> fully unrolled at trace time; the forward half of each
    # step is independent, the backward half is the recurrence carried in `h`.
    for i in range(q):
        xi = x_all[i]                                              # forward data, time i
        mcat = jnp.concatenate([m_all[i], m_all[q - 1 - i]], -1)   # [mask_f | mask_b]
        orig = jnp.concatenate([xi, h], -1)                        # (R, 2C) GCNM inputs

        # One MXU matmul for fwd+bwd GCNM and both GLU projections of this step.
        y = jnp.dot(orig * d, w_ref[i],
                    preferred_element_type=jnp.float32) + b_ref[i]  # (R, 4C)
        glu = y[:, :C2] * jax.nn.sigmoid(y[:, C2:])                 # [fwd GLU | bwd GLU]

        # Masked imputation: glu*(1-mask) + x_origin*mask (x_origin = data fwd / h bwd).
        blend = glu * (1.0 - mcat) + orig * mcat
        fwd = blend[:, :C]
        h = blend[:, C:]                                            # new backward state

        # out[:, i] = 0.5 * (fwd(time i) + bwd state after time q-1-i).
        o_ref[:, i] = (0.5 * (fwd + h)).reshape(B, N, C)


# ----------------------------------------------------------------------------- one-time prep
def pack_params(params_fwd, params_bwd, adjfor, adjbac, batch):
    """One-time prep (static per model): block-diag fused weights/biases + diag scales.

    Torch Linear: y = x @ W.T + b, then GLU split lhs=y[:, :C], rhs=y[:, C:].
    Step i of the kernel uses forward params[i] and backward params[q-1-i].
    """
    q = len(params_fwd)
    C = params_fwd[0][0].shape[1]
    N = adjfor.shape[0] // 2
    Z = jnp.zeros((C, C), jnp.float32)

    w_rows, b_rows = [], []
    for i in range(q):
        wf = params_fwd[i][0].T                  # (C, 2C)
        bf = params_fwd[i][1]                    # (2C,)
        wb = params_bwd[q - 1 - i][0].T          # backward params in reversed time order
        bb = params_bwd[q - 1 - i][1]
        top = jnp.concatenate([wf[:, :C], Z, wf[:, C:], Z], axis=1)        # x rows
        bot = jnp.concatenate([Z, wb[:, :C], Z, wb[:, C:]], axis=1)        # h rows
        w_rows.append(jnp.concatenate([top, bot], axis=0))                 # (2C, 4C)
        b_rows.append(jnp.concatenate([bf[:C], bb[:C], bf[C:], bb[C:]]))   # (4C,)
    w_big = jnp.stack(w_rows)                    # (q, 2C, 4C)
    b_big = jnp.stack(b_rows)[:, None, :]        # (q, 1, 4C)

    # Only diag rows N..2N-1 ever scale rows that reach the output; rows flattened
    # in (b, n) order so row b*N+n gets diag[N+n].
    dfor = jnp.tile(jnp.diagonal(adjfor)[N:], batch)[:, None]              # (B*N, 1)
    dbac = jnp.tile(jnp.diagonal(adjbac)[N:], batch)[:, None]
    d_cat = jnp.concatenate([jnp.broadcast_to(dfor, (batch * N, C)),
                             jnp.broadcast_to(dbac, (batch * N, C))], axis=1)  # (R, 2C)
    return w_big, b_big, d_cat


# ----------------------------------------------------------------------------- forward
@jax.jit
def bdgcnm_forward(data, mask_missing, w_big, b_big, d_cat):
    """data, mask_missing: (q, B, N, C)  ->  (B, q, N, C)."""
    q, B, N, C = data.shape
    return pl.pallas_call(
        _bdgcnm_kernel,
        out_shape=jax.ShapeDtypeStruct((B, q, N, C), jnp.float32),
    )(data, mask_missing, d_cat, w_big, b_big)


# ----------------------------------------------------------------------------- reference (pure JAX, mirrors the torch code)
def _reference(data, adjfor, adjbac, mask, params_f, params_b):
    q, B, N, C = data.shape
    data_t = jnp.swapaxes(data, 1, 2)       # (q, N, B, C)
    mask_t = jnp.swapaxes(mask, 1, 2)
    fill = jnp.mean(data_t)
    h0 = jnp.sum(mask_t, 0) / jnp.sum(data_t, 0)
    h0 = jnp.where(jnp.isnan(h0), fill, h0)
    h0_for, h0_bac = h0, h0

    def gcnm(h_two, adj, w, b, mm):
        idx = h_two.shape[0] // 2
        x_origin = h_two[idx:]
        d = jnp.einsum('ii,ijk->ijk', adj, h_two)
        y = jnp.einsum('ijk,lk->ijl', d, w) + b          # torch Linear: x @ W.T + b
        lhs, rhs = y[..., :C], y[..., C:]
        g = (lhs * jax.nn.sigmoid(rhs))[idx:]
        return g * (1 - mm) + x_origin * mm

    fwd, bwd = [], []
    for i in range(q):
        h_two = jnp.concatenate([h0_for, data_t[i]], 0)
        h0_for = gcnm(h_two, adjfor, params_f[i][0], params_f[i][1], mask_t[i])
        fwd.append(h0_for)
    for j in range(q - 1, -1, -1):
        h_two = jnp.concatenate([data_t[j], h0_bac], 0)
        h0_bac = gcnm(h_two, adjbac, params_b[j][0], params_b[j][1], mask_t[j])
        bwd.append(h0_bac)
    outs = []
    for k in range(q):
        temp = 0.5 * (fwd[k] + bwd[k])
        outs.append(jnp.swapaxes(temp, 0, 1)[:, None])
    return jnp.concatenate(outs, 1)


def init_params(key, slide_length, C):
    params_f, params_b = [], []
    for _ in range(slide_length):
        key, k1, k2, k3, k4 = jax.random.split(key, 5)
        params_f.append((jax.random.normal(k1, (2 * C, C), jnp.float32) * 0.1,
                         jax.random.normal(k2, (2 * C,), jnp.float32) * 0.1))
        params_b.append((jax.random.normal(k3, (2 * C, C), jnp.float32) * 0.1,
                         jax.random.normal(k4, (2 * C,), jnp.float32) * 0.1))
    return params_f, params_b


if __name__ == "__main__":
    q, B, N, C = 3, 2, 8, 32                    # slide_length, batch, nodes, features
    key = jax.random.PRNGKey(0)
    kd, km, ka1, ka2, kp = jax.random.split(key, 5)
    data = jax.random.normal(kd, (q, B, N, C), jnp.float32)
    mask_missing = (jax.random.uniform(km, (q, B, N, C)) < 0.7).astype(jnp.float32)
    adjfor = jax.random.normal(ka1, (2 * N, 2 * N), jnp.float32)
    adjbac = jax.random.normal(ka2, (2 * N, 2 * N), jnp.float32)
    params_f, params_b = init_params(kp, q, C)

    packed = pack_params(params_f, params_b, adjfor, adjbac, B)   # one-time prep
    out = bdgcnm_forward(data, mask_missing, *packed)
    out = jax.block_until_ready(out)
    assert out.shape == (B, q, N, C), out.shape

    ref = jax.block_until_ready(
        _reference(data, adjfor, adjbac, mask_missing, params_f, params_b))
    err = float(jnp.max(jnp.abs(out - ref)))
    assert err < 1e-2, f"max abs err {err}"
    print("KERNEL_OK")
</pallas_src>

<mosaic_0001>
module attributes {stable_mosaic.version = 11 : i64} {
  func.func @_bdgcnm_kernel(%arg0: memref<3x2x8x32xf32, #tpu.memory_space<vmem>>, %arg1: memref<3x2x8x32xf32, #tpu.memory_space<vmem>>, %arg2: memref<16x64xf32, #tpu.memory_space<vmem>>, %arg3: memref<3x64x128xf32, #tpu.memory_space<vmem>>, %arg4: memref<3x1x128xf32, #tpu.memory_space<vmem>>, %arg5: memref<2x3x8x32xf32, #tpu.memory_space<vmem>>) attributes {dimension_semantics = [], scalar_prefetch = 0 : i64, scratch_operands = 0 : i64, tpu.core_type = #tpu.core_type<tc>} {
    %c0 = arith.constant 0 : index
    %c0_0 = arith.constant 0 : index
    %c0_1 = arith.constant 0 : index
    %c0_2 = arith.constant 0 : index
    %0 = vector.load %arg0[%c0, %c0_0, %c0_1, %c0_2] : memref<3x2x8x32xf32, #tpu.memory_space<vmem>>, vector<3x2x8x32xf32>
    %1 = vector.shape_cast %0 : vector<3x2x8x32xf32> to vector<3x16x32xf32>
    %c0_3 = arith.constant 0 : index
    %c0_4 = arith.constant 0 : index
    %c0_5 = arith.constant 0 : index
    %c0_6 = arith.constant 0 : index
    %2 = vector.load %arg1[%c0_3, %c0_4, %c0_5, %c0_6] : memref<3x2x8x32xf32, #tpu.memory_space<vmem>>, vector<3x2x8x32xf32>
    %3 = vector.shape_cast %2 : vector<3x2x8x32xf32> to vector<3x16x32xf32>
    %c0_7 = arith.constant 0 : index
    %c0_8 = arith.constant 0 : index
    %4 = vector.load %arg2[%c0_7, %c0_8] : memref<16x64xf32, #tpu.memory_space<vmem>>, vector<16x64xf32>
    %5 = vector.shape_cast %1 : vector<3x16x32xf32> to vector<1x3x16x32xf32>
    %cst = arith.constant dense<0.000000e+00> : vector<1xf32>
    %6 = vector.multi_reduction <add>, %5, %cst [1, 2, 3] : vector<1x3x16x32xf32> to vector<1xf32>
    %7 = vector.shape_cast %6 : vector<1xf32> to vector<1x1x1x1xf32>
    %8 = vector.extract %7[0, 0, 0, 0] : f32 from vector<1x1x1x1xf32>
    %cst_9 = arith.constant 1.536000e+03 : f32
    %9 = arith.divf %8, %cst_9 : f32
    %cst_10 = arith.constant dense<0.000000e+00> : vector<16x32xf32>
    %10 = vector.multi_reduction <add>, %3, %cst_10 [0] : vector<3x16x32xf32> to vector<16x32xf32>
    %cst_11 = arith.constant dense<0.000000e+00> : vector<16x32xf32>
    %11 = vector.multi_reduction <add>, %1, %cst_11 [0] : vector<3x16x32xf32> to vector<16x32xf32>
    %12 = arith.divf %10, %11 : vector<16x32xf32>
    %13 = arith.cmpf one, %12, %12 : vector<16x32xf32>
    %14 = vector.broadcast %9 : f32 to vector<16x32xf32>
    %15 = arith.select %13, %14, %12 : vector<16x32xi1>, vector<16x32xf32>
    %16 = vector.extract_strided_slice %1 {offsets = [0, 0, 0], sizes = [1, 16, 32], strides = [1, 1, 1]} : vector<3x16x32xf32> to vector<1x16x32xf32>
    %17 = vector.shape_cast %16 : vector<1x16x32xf32> to vector<16x32xf32>
    %18 = vector.extract_strided_slice %3 {offsets = [0, 0, 0], sizes = [1, 16, 32], strides = [1, 1, 1]} : vector<3x16x32xf32> to vector<1x16x32xf32>
    %19 = vector.shape_cast %18 : vector<1x16x32xf32> to vector<16x32xf32>
    %20 = vector.extract_strided_slice %3 {offsets = [2, 0, 0], sizes = [1, 16, 32], strides = [1, 1, 1]} : vector<3x16x32xf32> to vector<1x16x32xf32>
    %21 = vector.shape_cast %20 : vector<1x16x32xf32> to vector<16x32xf32>
    %22 = tpu.concatenate %19, %21 in 1 : vector<16x32xf32>, vector<16x32xf32> -> vector<16x64xf32>
    %23 = tpu.concatenate %17, %15 in 1 : vector<16x32xf32>, vector<16x32xf32> -> vector<16x64xf32>
    %24 = arith.mulf %23, %4 : vector<16x64xf32>
    %c0_12 = arith.constant 0 : index
    %c0_13 = arith.constant 0 : index
    %c0_14 = arith.constant 0 : index
    %25 = vector.load %arg3[%c0_12, %c0_13, %c0_14] : memref<3x64x128xf32, #tpu.memory_space<vmem>>, vector<1x64x128xf32>
    %26 = vector.shape_cast %25 : vector<1x64x128xf32> to vector<64x128xf32>
    %cst_15 = arith.constant dense<0.000000e+00> : vector<16x128xf32>
    %27 = tpu.matmul %24, %26, %cst_15 {dimension_numbers = #tpu.dot_dimension_numbers<[1], [0], [0], [1], [0, 0, 1, 1], [], []>} : vector<16x64xf32>, vector<64x128xf32>, vector<16x128xf32> -> vector<16x128xf32>
    %c0_16 = arith.constant 0 : index
    %c0_17 = arith.constant 0 : index
    %c0_18 = arith.constant 0 : index
    %28 = vector.load %arg4[%c0_16, %c0_17, %c0_18] : memref<3x1x128xf32, #tpu.memory_space<vmem>>, vector<1x1x128xf32>
    %29 = vector.shape_cast %28 : vector<1x1x128xf32> to vector<1x128xf32>
    %30 = vector.broadcast %29 : vector<1x128xf32> to vector<16x128xf32>
    %31 = arith.addf %27, %30 : vector<16x128xf32>
    %32 = vector.extract_strided_slice %31 {offsets = [0, 0], sizes = [16, 64], strides = [1, 1]} : vector<16x128xf32> to vector<16x64xf32>
    %33 = vector.extract_strided_slice %31 {offsets = [0, 64], sizes = [16, 64], strides = [1, 1]} : vector<16x128xf32> to vector<16x64xf32>
    %34 = arith.negf %33 : vector<16x64xf32>
    %35 = math.exp %34 : vector<16x64xf32>
    %cst_19 = arith.constant 1.000000e+00 : f32
    %36 = vector.broadcast %cst_19 : f32 to vector<16x64xf32>
    %37 = arith.addf %36, %35 : vector<16x64xf32>
    %38 = arith.divf %36, %37 : vector<16x64xf32>
    %39 = arith.mulf %32, %38 : vector<16x64xf32>
    %cst_20 = arith.constant 1.000000e+00 : f32
    %40 = vector.broadcast %cst_20 : f32 to vector<16x64xf32>
    %41 = arith.subf %40, %22 : vector<16x64xf32>
    %42 = arith.mulf %39, %41 : vector<16x64xf32>
    %43 = arith.mulf %23, %22 : vector<16x64xf32>
    %44 = arith.addf %42, %43 : vector<16x64xf32>
    %45 = vector.extract_strided_slice %44 {offsets = [0, 0], sizes = [16, 32], strides = [1, 1]} : vector<16x64xf32> to vector<16x32xf32>
    %46 = vector.extract_strided_slice %44 {offsets = [0, 32], sizes = [16, 32], strides = [1, 1]} : vector<16x64xf32> to vector<16x32xf32>
    %47 = arith.addf %45, %46 : vector<16x32xf32>
    %cst_21 = arith.constant 5.000000e-01 : f32
    %48 = vector.broadcast %cst_21 : f32 to vector<16x32xf32>
    %49 = arith.mulf %48, %47 : vector<16x32xf32>
    %50 = vector.shape_cast %49 : vector<16x32xf32> to vector<2x8x32xf32>
    %c0_22 = arith.constant 0 : index
    %c0_23 = arith.constant 0 : index
    %c0_24 = arith.constant 0 : index
    %c0_25 = arith.constant 0 : index
    %51 = vector.load %arg5[%c0_22, %c0_23, %c0_24, %c0_25] : memref<2x3x8x32xf32, #tpu.memory_space<vmem>>, vector<2x1x8x32xf32>
    %52 = vector.shape_cast %51 : vector<2x1x8x32xf32> to vector<2x8x32xf32>
    %53 = vector.shape_cast %50 : vector<2x8x32xf32> to vector<2x1x8x32xf32>
    tpu.vector_store %arg5[%c0_22, %c0_23, %c0_24, %c0_25], %53 {strides = array<i32>} : memref<2x3x8x32xf32, #tpu.memory_space<vmem>>, vector<2x1x8x32xf32>,
    %54 = vector.extract_strided_slice %1 {offsets = [1, 0, 0], sizes = [1, 16, 32], strides = [1, 1, 1]} : vector<3x16x32xf32> to vector<1x16x32xf32>
    %55 = vector.shape_cast %54 : vector<1x16x32xf32> to vector<16x32xf32>
    %56 = vector.extract_strided_slice %3 {offsets = [1, 0, 0], sizes = [1, 16, 32], strides = [1, 1, 1]} : vector<3x16x32xf32> to vector<1x16x32xf32>
    %57 = vector.shape_cast %56 : vector<1x16x32xf32> to vector<16x32xf32>
    %58 = vector.extract_strided_slice %3 {offsets = [1, 0, 0], sizes = [1, 16, 32], strides = [1, 1, 1]} : vector<3x16x32xf32> to vector<1x16x32xf32>
    %59 = vector.shape_cast %58 : vector<1x16x32xf32> to vector<16x32xf32>
    %60 = tpu.concatenate %57, %59 in 1 : vector<16x32xf32>, vector<16x32xf32> -> vector<16x64xf32>
    %61 = tpu.concatenate %55, %46 in 1 : vector<16x32xf32>, vector<16x32xf32> -> vector<16x64xf32>
    %62 = arith.mulf %61, %4 : vector<16x64xf32>
    %c1 = arith.constant 1 : index
    %c0_26 = arith.constant 0 : index
    %c0_27 = arith.constant 0 : index
    %63 = vector.load %arg3[%c1, %c0_26, %c0_27] : memref<3x64x128xf32, #tpu.memory_space<vmem>>, vector<1x64x128xf32>
    %64 = vector.shape_cast %63 : vector<1x64x128xf32> to vector<64x128xf32>
    %cst_28 = arith.constant dense<0.000000e+00> : vector<16x128xf32>
    %65 = tpu.matmul %62, %64, %cst_28 {dimension_numbers = #tpu.dot_dimension_numbers<[1], [0], [0], [1], [0, 0, 1, 1], [], []>} : vector<16x64xf32>, vector<64x128xf32>, vector<16x128xf32> -> vector<16x128xf32>
    %c1_29 = arith.constant 1 : index
    %c0_30 = arith.constant 0 : index
    %c0_31 = arith.constant 0 : index
    %66 = vector.load %arg4[%c1_29, %c0_30, %c0_31] : memref<3x1x128xf32, #tpu.memory_space<vmem>>, vector<1x1x128xf32>
    %67 = vector.shape_cast %66 : vector<1x1x128xf32> to vector<1x128xf32>
    %68 = vector.broadcast %67 : vector<1x128xf32> to vector<16x128xf32>
    %69 = arith.addf %65, %68 : vector<16x128xf32>
    %70 = vector.extract_strided_slice %69 {offsets = [0, 0], sizes = [16, 64], strides = [1, 1]} : vector<16x128xf32> to vector<16x64xf32>
    %71 = vector.extract_strided_slice %69 {offsets = [0, 64], sizes = [16, 64], strides = [1, 1]} : vector<16x128xf32> to vector<16x64xf32>
    %72 = arith.negf %71 : vector<16x64xf32>
    %73 = math.exp %72 : vector<16x64xf32>
    %cst_32 = arith.constant 1.000000e+00 : f32
    %74 = vector.broadcast %cst_32 : f32 to vector<16x64xf32>
    %75 = arith.addf %74, %73 : vector<16x64xf32>
    %76 = arith.divf %74, %75 : vector<16x64xf32>
    %77 = arith.mulf %70, %76 : vector<16x64xf32>
    %cst_33 = arith.constant 1.000000e+00 : f32
    %78 = vector.broadcast %cst_33 : f32 to vector<16x64xf32>
    %79 = arith.subf %78, %60 : vector<16x64xf32>
    %80 = arith.mulf %77, %79 : vector<16x64xf32>
    %81 = arith.mulf %61, %60 : vector<16x64xf32>
    %82 = arith.addf %80, %81 : vector<16x64xf32>
    %83 = vector.extract_strided_slice %82 {offsets = [0, 0], sizes = [16, 32], strides = [1, 1]} : vector<16x64xf32> to vector<16x32xf32>
    %84 = vector.extract_strided_slice %82 {offsets = [0, 32], sizes = [16, 32], strides = [1, 1]} : vector<16x64xf32> to vector<16x32xf32>
    %85 = arith.addf %83, %84 : vector<16x32xf32>
    %cst_34 = arith.constant 5.000000e-01 : f32
    %86 = vector.broadcast %cst_34 : f32 to vector<16x32xf32>
    %87 = arith.mulf %86, %85 : vector<16x32xf32>
    %88 = vector.shape_cast %87 : vector<16x32xf32> to vector<2x8x32xf32>
    %c0_35 = arith.constant 0 : index
    %c1_36 = arith.constant 1 : index
    %c0_37 = arith.constant 0 : index
    %c0_38 = arith.constant 0 : index
    %89 = vector.load %arg5[%c0_35, %c1_36, %c0_37, %c0_38] : memref<2x3x8x32xf32, #tpu.memory_space<vmem>>, vector<2x1x8x32xf32>
    %90 = vector.shape_cast %89 : vector<2x1x8x32xf32> to vector<2x8x32xf32>
    %91 = vector.shape_cast %88 : vector<2x8x32xf32> to vector<2x1x8x32xf32>
    tpu.vector_store %arg5[%c0_35, %c1_36, %c0_37, %c0_38], %91 {strides = array<i32>} : memref<2x3x8x32xf32, #tpu.memory_space<vmem>>, vector<2x1x8x32xf32>,
    %92 = vector.extract_strided_slice %1 {offsets = [2, 0, 0], sizes = [1, 16, 32], strides = [1, 1, 1]} : vector<3x16x32xf32> to vector<1x16x32xf32>
    %93 = vector.shape_cast %92 : vector<1x16x32xf32> to vector<16x32xf32>
    %94 = vector.extract_strided_slice %3 {offsets = [2, 0, 0], sizes = [1, 16, 32], strides = [1, 1, 1]} : vector<3x16x32xf32> to vector<1x16x32xf32>
    %95 = vector.shape_cast %94 : vector<1x16x32xf32> to vector<16x32xf32>
    %96 = vector.extract_strided_slice %3 {offsets = [0, 0, 0], sizes = [1, 16, 32], strides = [1, 1, 1]} : vector<3x16x32xf32> to vector<1x16x32xf32>
    %97 = vector.shape_cast %96 : vector<1x16x32xf32> to vector<16x32xf32>
    %98 = tpu.concatenate %95, %97 in 1 : vector<16x32xf32>, vector<16x32xf32> -> vector<16x64xf32>
    %99 = tpu.concatenate %93, %84 in 1 : vector<16x32xf32>, vector<16x32xf32> -> vector<16x64xf32>
    %100 = arith.mulf %99, %4 : vector<16x64xf32>
    %c2 = arith.constant 2 : index
    %c0_39 = arith.constant 0 : index
    %c0_40 = arith.constant 0 : index
    %101 = vector.load %arg3[%c2, %c0_39, %c0_40] : memref<3x64x128xf32, #tpu.memory_space<vmem>>, vector<1x64x128xf32>
    %102 = vector.shape_cast %101 : vector<1x64x128xf32> to vector<64x128xf32>
    %cst_41 = arith.constant dense<0.000000e+00> : vector<16x128xf32>
    %103 = tpu.matmul %100, %102, %cst_41 {dimension_numbers = #tpu.dot_dimension_numbers<[1], [0], [0], [1], [0, 0, 1, 1], [], []>} : vector<16x64xf32>, vector<64x128xf32>, vector<16x128xf32> -> vector<16x128xf32>
    %c2_42 = arith.constant 2 : index
    %c0_43 = arith.constant 0 : index
    %c0_44 = arith.constant 0 : index
    %104 = vector.load %arg4[%c2_42, %c0_43, %c0_44] : memref<3x1x128xf32, #tpu.memory_space<vmem>>, vector<1x1x128xf32>
    %105 = vector.shape_cast %104 : vector<1x1x128xf32> to vector<1x128xf32>
    %106 = vector.broadcast %105 : vector<1x128xf32> to vector<16x128xf32>
    %107 = arith.addf %103, %106 : vector<16x128xf32>
    %108 = vector.extract_strided_slice %107 {offsets = [0, 0], sizes = [16, 64], strides = [1, 1]} : vector<16x128xf32> to vector<16x64xf32>
    %109 = vector.extract_strided_slice %107 {offsets = [0, 64], sizes = [16, 64], strides = [1, 1]} : vector<16x128xf32> to vector<16x64xf32>
    %110 = arith.negf %109 : vector<16x64xf32>
    %111 = math.exp %110 : vector<16x64xf32>
    %cst_45 = arith.constant 1.000000e+00 : f32
    %112 = vector.broadcast %cst_45 : f32 to vector<16x64xf32>
    %113 = arith.addf %112, %111 : vector<16x64xf32>
    %114 = arith.divf %112, %113 : vector<16x64xf32>
    %115 = arith.mulf %108, %114 : vector<16x64xf32>
    %cst_46 = arith.constant 1.000000e+00 : f32
    %116 = vector.broadcast %cst_46 : f32 to vector<16x64xf32>
    %117 = arith.subf %116, %98 : vector<16x64xf32>
    %118 = arith.mulf %115, %117 : vector<16x64xf32>
    %119 = arith.mulf %99, %98 : vector<16x64xf32>
    %120 = arith.addf %118, %119 : vector<16x64xf32>
    %121 = vector.extract_strided_slice %120 {offsets = [0, 0], sizes = [16, 32], strides = [1, 1]} : vector<16x64xf32> to vector<16x32xf32>
    %122 = vector.extract_strided_slice %120 {offsets = [0, 32], sizes = [16, 32], strides = [1, 1]} : vector<16x64xf32> to vector<16x32xf32>
    %123 = arith.addf %121, %122 : vector<16x32xf32>
    %cst_47 = arith.constant 5.000000e-01 : f32
    %124 = vector.broadcast %cst_47 : f32 to vector<16x32xf32>
    %125 = arith.mulf %124, %123 : vector<16x32xf32>
    %126 = vector.shape_cast %125 : vector<16x32xf32> to vector<2x8x32xf32>
    %c0_48 = arith.constant 0 : index
    %c2_49 = arith.constant 2 : index
    %c0_50 = arith.constant 0 : index
    %c0_51 = arith.constant 0 : index
    %127 = vector.load %arg5[%c0_48, %c2_49, %c0_50, %c0_51] : memref<2x3x8x32xf32, #tpu.memory_space<vmem>>, vector<2x1x8x32xf32>
    %128 = vector.shape_cast %127 : vector<2x1x8x32xf32> to vector<2x8x32xf32>
    %129 = vector.shape_cast %126 : vector<2x8x32xf32> to vector<2x1x8x32xf32>
    tpu.vector_store %arg5[%c0_48, %c2_49, %c0_50, %c0_51], %129 {strides = array<i32>} : memref<2x3x8x32xf32, #tpu.memory_space<vmem>>, vector<2x1x8x32xf32>,
    return
  }
}

</mosaic_0001>

<llo_original>
// kernel: bdgcnm_forward.1
$region0: #{bdgcnm_forward.1}
  #allocation0 [shape = 'u32[]', space=smem, size = 0x4, offset = 0x4, fixed_abs, tag = 'smem constant byte address 0x4 - core index']
  #allocation1 [shape = 'u32[144,128]{1,0:T(1,128)}', space=vmem, size = 0x12000, scoped, tag = 'internal scratch']
  %s0 = inlined_call_operand.hbm [shape: f32[3,2,8,32], index: 0, kind: input, shape index: {}]
  %s1 = inlined_call_operand.hbm [shape: f32[3,2,8,32], index: 1, kind: input, shape index: {}]
  %s2 = inlined_call_operand.hbm [shape: f32[16,64], index: 2, kind: input, shape index: {}]
  %s3 = inlined_call_operand.hbm [shape: f32[3,64,128], index: 3, kind: input, shape index: {}]
  %s4 = inlined_call_operand.vmem [shape: f32[3,1,128], index: 4, kind: input, shape index: {}]
  %s5 = inlined_call_operand.hbm [shape: f32[2,3,8,32], index: 5, kind: output, shape index: {}]
  %s6 = sld [smem:[#allocation0]]
  $region46: #{bdgcnm_forward.1} parent=0
    _
  %s8 = ssub.s32 1, %s6
  %s9 = scalar_select 0, %s8, %s6
  $region1: #{bdgcnm_forward.1} parent=0
    #allocation2 [shape = 'u8[24576]{0}', space=vmem, size = 0x6000, scoped, tag = 'input window, operand 0, single buffered']
    #allocation3 [shape = 's32[1]{0}', space=sflag, size = 0x4, scoped, tag = 'scoped memory for bdgcnm_forward.1']
    #allocation4 [shape = 's32[1]{0}', space=sflag, size = 0x4, scoped, tag = 'scoped memory for bdgcnm_forward.1']
    #allocation5 [shape = 'u8[24576]{0}', space=vmem, size = 0x6000, scoped, tag = 'input window, operand 1, single buffered']
    #allocation6 [shape = 's32[1]{0}', space=sflag, size = 0x4, scoped, tag = 'scoped memory for bdgcnm_forward.1']
    #allocation7 [shape = 'u8[8192]{0}', space=vmem, size = 0x2000, scoped, tag = 'input window, operand 2, single buffered']
    #allocation8 [shape = 'u8[98304]{0}', space=vmem, size = 0x18000, scoped, tag = 'input window, operand 3, single buffered']
    #allocation9 [shape = 's32[1]{0}', space=sflag, size = 0x4, scoped, tag = 'scoped memory for bdgcnm_forward.1']
    #allocation10 [shape = 'u8[24576]{0}', space=vmem, size = 0x6000, scoped, tag = 'output window, operand 0, single buffered']
    %10 = vsyncpa [#allocation3], 0
    %11 = vsyncpa [#allocation6], 0
    %12 = vsyncpa [#allocation9], 0
    %13 = vsyncpa [#allocation4], 0
    // Predicated region
    $region2: #{bdgcnm_forward.1} parent=1 // pred_check
      _
    $region3: #{bdgcnm_forward.1} parent=1 // pred_check_branch
      %15 = sbr.rel (0) target = $region5
    $region4: #{bdgcnm_forward.1} parent=1 // pred_region
      %s17 = ssub.s32 768, 768
      %18 = vsyncadd [#allocation3], %s17
      %s19 = sshll.u32 [#allocation2], 4
      %s20 = int_to_ptr.vmem [resolvable:$true] %s19
      %25 = dma.hbm_to_vmem [thread:$0]  %s0, 768, %s20, [#allocation3], 128, 128, 8
    $region5: #{bdgcnm_forward.1} parent=1 // pred_fallthru
      _
    // Predicated region
    $region6: #{bdgcnm_forward.1} parent=1 // pred_check
      _
    $region7: #{bdgcnm_forward.1} parent=1 // pred_check_branch
      %27 = sbr.rel (0) target = $region9
    $region8: #{bdgcnm_forward.1} parent=1 // pred_region
      %s29 = ssub.s32 768, 768
      %30 = vsyncadd [#allocation6], %s29
      %s31 = sshll.u32 [#allocation5], 4
      %s32 = int_to_ptr.vmem [resolvable:$true] %s31
      %37 = dma.hbm_to_vmem [thread:$0]  %s1, 768, %s32, [#allocation6], 128, 128, 8
    $region9: #{bdgcnm_forward.1} parent=1 // pred_fallthru
      _
    // Predicated region
    $region10: #{bdgcnm_forward.1} parent=1 // pred_check
      _
    $region11: #{bdgcnm_forward.1} parent=1 // pred_check_branch
      %39 = sbr.rel (0) target = $region13
    $region12: #{bdgcnm_forward.1} parent=1 // pred_region
      %s41 = ssub.s32 256, 256
      %42 = vsyncadd [#allocation6], %s41
      %s43 = sshll.u32 [#allocation7], 4
      %s44 = int_to_ptr.vmem [resolvable:$true] %s43
      %49 = dma.hbm_to_vmem [thread:$0]  %s2, 256, %s44, [#allocation6], 128, 128, 8
    $region13: #{bdgcnm_forward.1} parent=1 // pred_fallthru
      _
    // Predicated region
    $region14: #{bdgcnm_forward.1} parent=1 // pred_check
      _
    $region15: #{bdgcnm_forward.1} parent=1 // pred_check_branch
      %51 = sbr.rel (0) target = $region17
    $region16: #{bdgcnm_forward.1} parent=1 // pred_region
      %s53 = ssub.s32 3072, 3072
      %54 = vsyncadd [#allocation9], %s53
      %s55 = sshll.u32 [#allocation8], 4
      %s56 = int_to_ptr.vmem [resolvable:$true] %s55
      %61 = dma.hbm_to_vmem [thread:$0]  %s3, 3072, %s56, [#allocation9], 128, 128, 8
    $region17: #{bdgcnm_forward.1} parent=1 // pred_fallthru
      _
    // Predicated region
    $region18: #{bdgcnm_forward.1} parent=1 // pred_check
      _
    $region19: #{bdgcnm_forward.1} parent=1 // pred_check_branch
      %63 = sbr.rel (0) target = $region21
    $region20: #{bdgcnm_forward.1} parent=1 // pred_region
      _
    $region21: #{bdgcnm_forward.1} parent=1 // pred_fallthru
      _
    // Predicated region
    $region22: #{bdgcnm_forward.1} parent=1 // pred_check
      _
    $region23: #{bdgcnm_forward.1} parent=1 // pred_check_branch
      %65 = sbr.rel (0) target = $region25
    $region24: #{bdgcnm_forward.1} parent=1 // pred_region
      %66 = dma.done [#allocation3], 768
    $region25: #{bdgcnm_forward.1} parent=1 // pred_fallthru
      _
    // Predicated region
    $region26: #{bdgcnm_forward.1} parent=1 // pred_check
      _
    $region27: #{bdgcnm_forward.1} parent=1 // pred_check_branch
      %68 = sbr.rel (0) target = $region29
    $region28: #{bdgcnm_forward.1} parent=1 // pred_region
      %69 = dma.done [#allocation6], 768
    $region29: #{bdgcnm_forward.1} parent=1 // pred_fallthru
      _
    // Predicated region
    $region30: #{bdgcnm_forward.1} parent=1 // pred_check
      _
    $region31: #{bdgcnm_forward.1} parent=1 // pred_check_branch
      %71 = sbr.rel (0) target = $region33
    $region32: #{bdgcnm_forward.1} parent=1 // pred_region
      %72 = dma.done [#allocation6], 256
    $region33: #{bdgcnm_forward.1} parent=1 // pred_fallthru
      _
    // Predicated region
    $region34: #{bdgcnm_forward.1} parent=1 // pred_check
      _
    $region35: #{bdgcnm_forward.1} parent=1 // pred_check_branch
      %74 = sbr.rel (0) target = $region37
    $region36: #{bdgcnm_forward.1} parent=1 // pred_region
      %75 = dma.done [#allocation9], 3072
    $region37: #{bdgcnm_forward.1} parent=1 // pred_fallthru
      _
    %v76 = vld [vmem:[#allocation2] sm:$0xff]
    %v77 = vld [vmem:[#allocation2 + $0x8] sm:$0xff]
    %v78 = vld [vmem:[#allocation2 + $0x10] sm:$0xff]
    %v79 = vld [vmem:[#allocation2 + $0x18] sm:$0xff]
    %v80 = vld [vmem:[#allocation2 + $0x20] sm:$0xff]
    %v81 = vld [vmem:[#allocation2 + $0x28] sm:$0xff]
    %v82 = vld [vmem:[#allocation5] sm:$0xff]
    %v83 = vld [vmem:[#allocation5 + $0x8] sm:$0xff]
    %v84 = vld [vmem:[#allocation5 + $0x10] sm:$0xff]
    %v85 = vld [vmem:[#allocation5 + $0x18] sm:$0xff]
    %v86 = vld [vmem:[#allocation5 + $0x20] sm:$0xff]
    %v87 = vld [vmem:[#allocation5 + $0x28] sm:$0xff]
    %v88 = vld [vmem:[#allocation7] sm:$0xff]
    %v89 = vld [vmem:[#allocation7 + $0x8] sm:$0xff]
    %vm90 = vcmask 261120
    %v91 = vsel %vm90, %v76, 0.0
    %v92 = vsel %vm90, %v77, 0.0
    %v93 = vadd.f32 %v91, %v92
    %v94 = vsel %vm90, %v78, 0.0
    %v95 = vadd.f32 %v93, %v94
    %v96 = vsel %vm90, %v79, 0.0
    %v97 = vadd.f32 %v95, %v96
    %v98 = vsel %vm90, %v80, 0.0
    %v99 = vadd.f32 %v97, %v98
    %v100 = vsel %vm90, %v81, 0.0
    %v101 = vadd.f32 %v99, %v100
    %102 = vadd.xlane.f32.xlu0 %v101
    %v103 = vpop.xlane.xlu0 %102
    %v104 = vrot.slane %v103, 4
    %v105 = vadd.f32 %v103, %v104
    %v106 = vrot.slane %v105, 2
    %v107 = vadd.f32 %v105, %v106
    %v108 = vrot.slane %v107, 1
    %v109 = vadd.f32 %v107, %v108
    %s110 = vtos %v109
    %v111 = vrcp.pop 1536.0
    %s112 = vtos %v111
    %s113 = smul.f32 %s110, %s112
    %v114 = vsel %vm90, %v82, 0.0
    %v115 = vsel %vm90, %v84, 0.0
    %v116 = vadd.f32 %v114, %v115
    %v117 = vsel %vm90, %v86, 0.0
    %v118 = vadd.f32 %v116, %v117
    %v119 = vsel %vm90, %v83, 0.0
    %v120 = vsel %vm90, %v85, 0.0
    %v121 = vadd.f32 %v119, %v120
    %v122 = vsel %vm90, %v87, 0.0
    %v123 = vadd.f32 %v121, %v122
    %v124 = vadd.f32 %v91, %v94
    %v125 = vadd.f32 %v124, %v98
    %v126 = vadd.f32 %v92, %v96
    %v127 = vadd.f32 %v126, %v100
    %v128 = vrcp.pop %v125
    %v129 = vmul.f32 %v118, %v128
    %v130 = vrcp.pop %v127
    %v131 = vmul.f32 %v123, %v130
    %vm132 = vcmp.ne.f32.partialorder %v129, %v129
    %vm133 = vcmp.ne.f32.partialorder %v131, %v131
    %v134 = vstv %s113
    %v135 = vsel %vm132, %v134, %v129
    %v136 = vsel %vm133, %v134, %v131
    %139 = vrot.lane.b32.xlu0 %v86, 32
    %v140 = vpop.permute.xlu0 %139
    %141 = vrot.lane.b32.xlu0 %v87, 32
    %v142 = vpop.permute.xlu0 %141
    %v145 = vsel %vm90, %v82, %v140
    %v146 = vsel %vm90, %v83, %v142
    %149 = vrot.lane.b32.xlu0 %v135, 32
    %v150 = vpop.permute.xlu0 %149
    %151 = vrot.lane.b32.xlu0 %v136, 32
    %v152 = vpop.permute.xlu0 %151
    %v155 = vsel %vm90, %v76, %v150
    %v156 = vsel %vm90, %v77, %v152
    %v157 = vmul.f32 %v155, %v88
    %v158 = vmul.f32 %v156, %v89
    %v159 = vld [vmem:[#allocation8] sm:$0xff]
    %v160 = vld [vmem:[#allocation8 + $0x8] sm:$0xff]
    %v161 = vld [vmem:[#allocation8 + $0x10] sm:$0xff]
    %v162 = vld [vmem:[#allocation8 + $0x18] sm:$0xff]
    %v163 = vld [vmem:[#allocation8 + $0x20] sm:$0xff]
    %v164 = vld [vmem:[#allocation8 + $0x28] sm:$0xff]
    %v165 = vld [vmem:[#allocation8 + $0x30] sm:$0xff]
    %v166 = vld [vmem:[#allocation8 + $0x38] sm:$0xff]
    %v167 = vld [vmem:[%s4] sm:$0x1]
    %v169 = vlaneseq
    %v170 = vshrl.u32 %v169, 7
    %v171 = vsub.s32 0, %v170
    %v172 = vrot.slane %v167, %v171
    %vm174 = vcmask 523264
    %v176 = vsel %vm174, %v157, 0
    %v179 = vsel %vm174, %v158, 0
    %181 = vmatprep.subr.mxu0 0.0
    %182 = vmatpush1.msra.mxu0 %v159
    %183 = vmatprep.subr.mxu0 0.0
    %184 = vmatpush1.msra.mxu0 %v160
    %185 = vmatprep.subr.mxu0 0.0
    %186 = vmatpush1.msra.mxu0 %v161
    %187 = vmatprep.subr.mxu0 0.0
    %188 = vmatpush1.msra.mxu0 %v162
    %189 = vmatprep.subr.mxu0 0.0
    %190 = vmatpush1.msra.mxu0 %v163
    %191 = vmatprep.subr.mxu0 0.0
    %192 = vmatpush1.msra.mxu0 %v164
    %193 = vmatprep.subr.mxu0 0.0
    %194 = vmatpush1.msra.mxu0 %v165
    %195 = vmatprep.subr.mxu0 0.0
    %196 = vmatpush1.msra.mxu0 %v166
    %197 = vmatprep.subr.mxu0 0.0
    %198 = vmatpush1.msra.mxu0 0.0
    %199 = vmatprep.subr.mxu0 0.0
    %200 = vmatpush1.msra.mxu0 0.0
    %201 = vmatprep.subr.mxu0 0.0
    %202 = vmatpush1.msra.mxu0 0.0
    %203 = vmatprep.subr.mxu0 0.0
    %204 = vmatpush1.msra.mxu0 0.0
    %205 = vmatprep.subr.mxu0 0.0
    %206 = vmatpush1.msra.mxu0 0.0
    %207 = vmatprep.subr.mxu0 0.0
    %208 = vmatpush1.msra.mxu0 0.0
    %209 = vmatprep.subr.mxu0 0.0
    %210 = vmatpush1.msra.mxu0 0.0
    %211 = vmatprep.subr.mxu0 0.0
    %212 = vmatpush1.msra.mxu0 0.0
    %213 = vmatprep.subr.mxu0 0.0
    %214 = vmatpush1.msra.mxu0 0.0
    %215 = vmatprep.subr.mxu0 0.0
    %216 = vmatpush1.msra.mxu0 0.0
    %217 = vmatprep.subr.mxu0 0.0
    %218 = vmatpush1.msra.mxu0 0.0
    %219 = vmatprep.subr.mxu0 0.0
    %220 = vmatpush1.msra.mxu0 0.0
    %221 = vmatprep.subr.mxu0 0.0
    %222 = vmatpush1.msra.mxu0 0.0
    %223 = vmatprep.subr.mxu0 0.0
    %224 = vmatpush1.msra.mxu0 0.0
    %225 = vmatprep.subr.mxu0 0.0
    %226 = vmatpush1.msra.mxu0 0.0
    %227 = vmatprep.subr.mxu0 0.0
    %228 = vmatpush1.msra.mxu0 0.0
    %229 = vmatprep.subr.mxu0 0.0
    %230 = vmatpush1.msra.mxu0 0.0
    %231 = vmatprep.subr.mxu0 0.0
    %232 = vmatpush1.msra.mxu0 0.0
    %233 = vmatprep.subr.mxu0 0.0
    %234 = vmatpush1.msra.mxu0 0.0
    %235 = vmatprep.subr.mxu0 0.0
    %236 = vmatpush1.msra.mxu0 0.0
    %237 = vmatprep.subr.mxu0 0.0
    %238 = vmatpush1.msra.mxu0 0.0
    %239 = vmatprep.subr.mxu0 0.0
    %240 = vmatpush1.msra.mxu0 0.0
    %241 = vmatprep.subr.mxu0 0.0
    %242 = vmatpush1.msra.mxu0 0.0
    %243 = vmatprep.subr.mxu0 0.0
    %244 = vmatpush1.msra.mxu0 0.0
    %245 = vmatprep.mubr.f32.mxu0 0.0
    %246 = vmatmul.mubr.f32.gmra.mrb[0].mxu0 %v176
    %v247 = vpop.f32.mrb[0].mxu0
    %v248 = vadd.f32 %v172, %v247
    %v249 = vpop.f32.mrb[0].mxu0
    %250 = vmatprep.mubr.f32.mxu0 0.0
    %251 = vmatmul.mubr.f32.gmra.mrb[0].mxu0 %v179
    %v252 = vpop.f32.mrb[0].mxu0
    %v253 = vadd.f32 %v172, %v252
    %v254 = vpop.f32.mrb[0].mxu0
    %255 = vdwg.mxu0
    %v256 = vxor.u32 %v248, 2147483648
    %v257 = vxor.u32 %v253, 2147483648
    %v258 = vmul.f32 %v256, 1.442695
    %v259 = vpow.pop %v258
    %v260 = vmul.f32 %v257, 1.442695
    %v261 = vpow.pop %v260
    %v262 = vadd.f32 %v259, 1.0
    %v263 = vadd.f32 %v261, 1.0
    %v264 = vrcp.pop %v262
    %v265 = vmul.f32 1.0, %v264
    %v266 = vrcp.pop %v263
    %v267 = vmul.f32 1.0, %v266
    %270 = vrot.lane.b32.xlu0 %v265, 64
    %v271 = vpop.permute.xlu0 %270
    %272 = vrot.lane.b32.xlu0 %v267, 64
    %v273 = vpop.permute.xlu0 %272
    %v276 = vmul.f32 %v248, %v271
    %v277 = vmul.f32 %v253, %v273
    %v278 = vsub.f32 1.0, %v145
    %v279 = vsub.f32 1.0, %v146
    %v280 = vmul.f32 %v276, %v278
    %v281 = vmul.f32 %v277, %v279
    %v282 = vmul.f32 %v155, %v145
    %v283 = vmul.f32 %v156, %v146
    %v284 = vadd.f32 %v280, %v282
    %v285 = vadd.f32 %v281, %v283
    %288 = vrot.lane.b32.xlu0 %v284, 96
    %v289 = vpop.permute.xlu0 %288
    %290 = vrot.lane.b32.xlu0 %v285, 96
    %v291 = vpop.permute.xlu0 %290
    %v294 = vadd.f32 %v284, %v289
    %v295 = vadd.f32 %v285, %v291
    %v296 = vmul.f32 %v294, 0.5
    %v297 = vmul.f32 %v295, 0.5
    %298 = vst.msk [vmem:[#allocation10] sm:$0xff] %vm90, %v296
    %299 = vst.msk [vmem:[#allocation10 + $0x18] sm:$0xff] %vm90, %v297
    %302 = vrot.lane.b32.xlu0 %v84, 32
    %v303 = vpop.permute.xlu0 %302
    %304 = vrot.lane.b32.xlu0 %v85, 32
    %v305 = vpop.permute.xlu0 %304
    %v308 = vsel %vm90, %v84, %v303
    %v309 = vsel %vm90, %v85, %v305
    %v310 = vsel %vm90, %v78, %v284
    %v311 = vsel %vm90, %v79, %v285
    %v312 = vmul.f32 %v310, %v88
    %v313 = vmul.f32 %v311, %v89
    %s314 = scalar_lea.vmem [#allocation8], 64
    %v315 = vld [vmem:[%s314] sm:$0xff]
    %v316 = vld [vmem:[%s314 + $0x8] sm:$0xff]
    %v317 = vld [vmem:[%s314 + $0x10] sm:$0xff]
    %v318 = vld [vmem:[%s314 + $0x18] sm:$0xff]
    %v319 = vld [vmem:[%s314 + $0x20] sm:$0xff]
    %v320 = vld [vmem:[%s314 + $0x28] sm:$0xff]
    %v321 = vld [vmem:[%s314 + $0x30] sm:$0xff]
    %v322 = vld [vmem:[%s314 + $0x38] sm:$0xff]
    %s323 = scalar_lea.vmem %s4, 1
    %v324 = vld [vmem:[%s323] sm:$0x1]
    %v326 = vlaneseq
    %v327 = vshrl.u32 %v326, 7
    %v328 = vsub.s32 0, %v327
    %v329 = vrot.slane %v324, %v328
    %v332 = vsel %vm174, %v312, 0
    %v335 = vsel %vm174, %v313, 0
    %337 = vmatprep.subr.mxu0 0.0
    %338 = vmatpush1.msra.mxu0 %v315
    %339 = vmatprep.subr.mxu0 0.0
    %340 = vmatpush1.msra.mxu0 %v316
    %341 = vmatprep.subr.mxu0 0.0
    %342 = vmatpush1.msra.mxu0 %v317
    %343 = vmatprep.subr.mxu0 0.0
    %344 = vmatpush1.msra.mxu0 %v318
    %345 = vmatprep.subr.mxu0 0.0
    %346 = vmatpush1.msra.mxu0 %v319
    %347 = vmatprep.subr.mxu0 0.0
    %348 = vmatpush1.msra.mxu0 %v320
    %349 = vmatprep.subr.mxu0 0.0
    %350 = vmatpush1.msra.mxu0 %v321
    %351 = vmatprep.subr.mxu0 0.0
    %352 = vmatpush1.msra.mxu0 %v322
    %353 = vmatprep.subr.mxu0 0.0
    %354 = vmatpush1.msra.mxu0 0.0
    %355 = vmatprep.subr.mxu0 0.0
    %356 = vmatpush1.msra.mxu0 0.0
    %357 = vmatprep.subr.mxu0 0.0
    %358 = vmatpush1.msra.mxu0 0.0
    %359 = vmatprep.subr.mxu0 0.0
    %360 = vmatpush1.msra.mxu0 0.0
    %361 = vmatprep.subr.mxu0 0.0
    %362 = vmatpush1.msra.mxu0 0.0
    %363 = vmatprep.subr.mxu0 0.0
    %364 = vmatpush1.msra.mxu0 0.0
    %365 = vmatprep.subr.mxu0 0.0
    %366 = vmatpush1.msra.mxu0 0.0
    %367 = vmatprep.subr.mxu0 0.0
    %368 = vmatpush1.msra.mxu0 0.0
    %369 = vmatprep.subr.mxu0 0.0
    %370 = vmatpush1.msra.mxu0 0.0
    %371 = vmatprep.subr.mxu0 0.0
    %372 = vmatpush1.msra.mxu0 0.0
    %373 = vmatprep.subr.mxu0 0.0
    %374 = vmatpush1.msra.mxu0 0.0
    %375 = vmatprep.subr.mxu0 0.0
    %376 = vmatpush1.msra.mxu0 0.0
    %377 = vmatprep.subr.mxu0 0.0
    %378 = vmatpush1.msra.mxu0 0.0
    %379 = vmatprep.subr.mxu0 0.0
    %380 = vmatpush1.msra.mxu0 0.0
    %381 = vmatprep.subr.mxu0 0.0
    %382 = vmatpush1.msra.mxu0 0.0
    %383 = vmatprep.subr.mxu0 0.0
    %384 = vmatpush1.msra.mxu0 0.0
    %385 = vmatprep.subr.mxu0 0.0
    %386 = vmatpush1.msra.mxu0 0.0
    %387 = vmatprep.subr.mxu0 0.0
    %388 = vmatpush1.msra.mxu0 0.0
    %389 = vmatprep.subr.mxu0 0.0
    %390 = vmatpush1.msra.mxu0 0.0
    %391 = vmatprep.subr.mxu0 0.0
    %392 = vmatpush1.msra.mxu0 0.0
    %393 = vmatprep.subr.mxu0 0.0
    %394 = vmatpush1.msra.mxu0 0.0
    %395 = vmatprep.subr.mxu0 0.0
    %396 = vmatpush1.msra.mxu0 0.0
    %397 = vmatprep.subr.mxu0 0.0
    %398 = vmatpush1.msra.mxu0 0.0
    %399 = vmatprep.subr.mxu0 0.0
    %400 = vmatpush1.msra.mxu0 0.0
    %401 = vmatprep.mubr.f32.mxu0 0.0
    %402 = vmatmul.mubr.f32.gmra.mrb[0].mxu0 %v332
    %v403 = vpop.f32.mrb[0].mxu0
    %v404 = vadd.f32 %v329, %v403
    %v405 = vpop.f32.mrb[0].mxu0
    %406 = vmatprep.mubr.f32.mxu0 0.0
    %407 = vmatmul.mubr.f32.gmra.mrb[0].mxu0 %v335
    %v408 = vpop.f32.mrb[0].mxu0
    %v409 = vadd.f32 %v329, %v408
    %v410 = vpop.f32.mrb[0].mxu0
    %411 = vdwg.mxu0
    %v412 = vxor.u32 %v404, 2147483648
    %v413 = vxor.u32 %v409, 2147483648
    %v414 = vmul.f32 %v412, 1.442695
    %v415 = vpow.pop %v414
    %v416 = vmul.f32 %v413, 1.442695
    %v417 = vpow.pop %v416
    %v418 = vadd.f32 %v415, 1.0
    %v419 = vadd.f32 %v417, 1.0
    %v420 = vrcp.pop %v418
    %v421 = vmul.f32 1.0, %v420
    %v422 = vrcp.pop %v419
    %v423 = vmul.f32 1.0, %v422
    %426 = vrot.lane.b32.xlu0 %v421, 64
    %v427 = vpop.permute.xlu0 %426
    %428 = vrot.lane.b32.xlu0 %v423, 64
    %v429 = vpop.permute.xlu0 %428
    %v432 = vmul.f32 %v404, %v427
    %v433 = vmul.f32 %v409, %v429
    %v434 = vsub.f32 1.0, %v308
    %v435 = vsub.f32 1.0, %v309
    %v436 = vmul.f32 %v432, %v434
    %v437 = vmul.f32 %v433, %v435
    %v438 = vmul.f32 %v310, %v308
    %v439 = vmul.f32 %v311, %v309
    %v440 = vadd.f32 %v436, %v438
    %v441 = vadd.f32 %v437, %v439
    %444 = vrot.lane.b32.xlu0 %v440, 96
    %v445 = vpop.permute.xlu0 %444
    %446 = vrot.lane.b32.xlu0 %v441, 96
    %v447 = vpop.permute.xlu0 %446
    %v450 = vadd.f32 %v440, %v445
    %v451 = vadd.f32 %v441, %v447
    %v452 = vmul.f32 %v450, 0.5
    %v453 = vmul.f32 %v451, 0.5
    %s454 = scalar_lea.vmem [#allocation10], 8
    %455 = vst.msk [vmem:[%s454] sm:$0xff] %vm90, %v452
    %456 = vst.msk [vmem:[%s454 + $0x18] sm:$0xff] %vm90, %v453
    %459 = vrot.lane.b32.xlu0 %v82, 32
    %v460 = vpop.permute.xlu0 %459
    %461 = vrot.lane.b32.xlu0 %v83, 32
    %v462 = vpop.permute.xlu0 %461
    %v465 = vsel %vm90, %v86, %v460
    %v466 = vsel %vm90, %v87, %v462
    %v467 = vsel %vm90, %v80, %v440
    %v468 = vsel %vm90, %v81, %v441
    %v469 = vmul.f32 %v467, %v88
    %v470 = vmul.f32 %v468, %v89
    %s471 = scalar_lea.vmem [#allocation8], 128
    %v472 = vld [vmem:[%s471] sm:$0xff]
    %v473 = vld [vmem:[%s471 + $0x8] sm:$0xff]
    %v474 = vld [vmem:[%s471 + $0x10] sm:$0xff]
    %v475 = vld [vmem:[%s471 + $0x18] sm:$0xff]
    %v476 = vld [vmem:[%s471 + $0x20] sm:$0xff]
    %v477 = vld [vmem:[%s471 + $0x28] sm:$0xff]
    %v478 = vld [vmem:[%s471 + $0x30] sm:$0xff]
    %v479 = vld [vmem:[%s471 + $0x38] sm:$0xff]
    %s480 = scalar_lea.vmem %s4, 2
    %v481 = vld [vmem:[%s480] sm:$0x1]
    %v483 = vlaneseq
    %v484 = vshrl.u32 %v483, 7
    %v485 = vsub.s32 0, %v484
    %v486 = vrot.slane %v481, %v485
    %v489 = vsel %vm174, %v469, 0
    %v492 = vsel %vm174, %v470, 0
    %494 = vmatprep.subr.mxu0 0.0
    %495 = vmatpush1.msra.mxu0 %v472
    %496 = vmatprep.subr.mxu0 0.0
    %497 = vmatpush1.msra.mxu0 %v473
    %498 = vmatprep.subr.mxu0 0.0
    %499 = vmatpush1.msra.mxu0 %v474
    %500 = vmatprep.subr.mxu0 0.0
    %501 = vmatpush1.msra.mxu0 %v475
    %502 = vmatprep.subr.mxu0 0.0
    %503 = vmatpush1.msra.mxu0 %v476
    %504 = vmatprep.subr.mxu0 0.0
    %505 = vmatpush1.msra.mxu0 %v477
    %506 = vmatprep.subr.mxu0 0.0
    %507 = vmatpush1.msra.mxu0 %v478
    %508 = vmatprep.subr.mxu0 0.0
    %509 = vmatpush1.msra.mxu0 %v479
    %510 = vmatprep.subr.mxu0 0.0
    %511 = vmatpush1.msra.mxu0 0.0
    %512 = vmatprep.subr.mxu0 0.0
    %513 = vmatpush1.msra.mxu0 0.0
    %514 = vmatprep.subr.mxu0 0.0
    %515 = vmatpush1.msra.mxu0 0.0
    %516 = vmatprep.subr.mxu0 0.0
    %517 = vmatpush1.msra.mxu0 0.0
    %518 = vmatprep.subr.mxu0 0.0
    %519 = vmatpush1.msra.mxu0 0.0
    %520 = vmatprep.subr.mxu0 0.0
    %521 = vmatpush1.msra.mxu0 0.0
    %522 = vmatprep.subr.mxu0 0.0
    %523 = vmatpush1.msra.mxu0 0.0
    %524 = vmatprep.subr.mxu0 0.0
    %525 = vmatpush1.msra.mxu0 0.0
    %526 = vmatprep.subr.mxu0 0.0
    %527 = vmatpush1.msra.mxu0 0.0
    %528 = vmatprep.subr.mxu0 0.0
    %529 = vmatpush1.msra.mxu0 0.0
    %530 = vmatprep.subr.mxu0 0.0
    %531 = vmatpush1.msra.mxu0 0.0
    %532 = vmatprep.subr.mxu0 0.0
    %533 = vmatpush1.msra.mxu0 0.0
    %534 = vmatprep.subr.mxu0 0.0
    %535 = vmatpush1.msra.mxu0 0.0
    %536 = vmatprep.subr.mxu0 0.0
    %537 = vmatpush1.msra.mxu0 0.0
    %538 = vmatprep.subr.mxu0 0.0
    %539 = vmatpush1.msra.mxu0 0.0
    %540 = vmatprep.subr.mxu0 0.0
    %541 = vmatpush1.msra.mxu0 0.0
    %542 = vmatprep.subr.mxu0 0.0
    %543 = vmatpush1.msra.mxu0 0.0
    %544 = vmatprep.subr.mxu0 0.0
    %545 = vmatpush1.msra.mxu0 0.0
    %546 = vmatprep.subr.mxu0 0.0
    %547 = vmatpush1.msra.mxu0 0.0
    %548 = vmatprep.subr.mxu0 0.0
    %549 = vmatpush1.msra.mxu0 0.0
    %550 = vmatprep.subr.mxu0 0.0
    %551 = vmatpush1.msra.mxu0 0.0
    %552 = vmatprep.subr.mxu0 0.0
    %553 = vmatpush1.msra.mxu0 0.0
    %554 = vmatprep.subr.mxu0 0.0
    %555 = vmatpush1.msra.mxu0 0.0
    %556 = vmatprep.subr.mxu0 0.0
    %557 = vmatpush1.msra.mxu0 0.0
    %558 = vmatprep.mubr.f32.mxu0 0.0
    %559 = vmatmul.mubr.f32.gmra.mrb[0].mxu0 %v489
    %v560 = vpop.f32.mrb[0].mxu0
    %v561 = vadd.f32 %v486, %v560
    %v562 = vpop.f32.mrb[0].mxu0
    %563 = vmatprep.mubr.f32.mxu0 0.0
    %564 = vmatmul.mubr.f32.gmra.mrb[0].mxu0 %v492
    %v565 = vpop.f32.mrb[0].mxu0
    %v566 = vadd.f32 %v486, %v565
    %v567 = vpop.f32.mrb[0].mxu0
    %568 = vdwg.mxu0
    %v569 = vxor.u32 %v561, 2147483648
    %v570 = vxor.u32 %v566, 2147483648
    %v571 = vmul.f32 %v569, 1.442695
    %v572 = vpow.pop %v571
    %v573 = vmul.f32 %v570, 1.442695
    %v574 = vpow.pop %v573
    %v575 = vadd.f32 %v572, 1.0
    %v576 = vadd.f32 %v574, 1.0
    %v577 = vrcp.pop %v575
    %v578 = vmul.f32 1.0, %v577
    %v579 = vrcp.pop %v576
    %v580 = vmul.f32 1.0, %v579
    %583 = vrot.lane.b32.xlu0 %v578, 64
    %v584 = vpop.permute.xlu0 %583
    %585 = vrot.lane.b32.xlu0 %v580, 64
    %v586 = vpop.permute.xlu0 %585
    %v589 = vmul.f32 %v561, %v584
    %v590 = vmul.f32 %v566, %v586
    %v591 = vsub.f32 1.0, %v465
    %v592 = vsub.f32 1.0, %v466
    %v593 = vmul.f32 %v589, %v591
    %v594 = vmul.f32 %v590, %v592
    %v595 = vmul.f32 %v467, %v465
    %v596 = vmul.f32 %v468, %v466
    %v597 = vadd.f32 %v593, %v595
    %v598 = vadd.f32 %v594, %v596
    %601 = vrot.lane.b32.xlu0 %v597, 96
    %v602 = vpop.permute.xlu0 %601
    %603 = vrot.lane.b32.xlu0 %v598, 96
    %v604 = vpop.permute.xlu0 %603
    %v607 = vadd.f32 %v597, %v602
    %v608 = vadd.f32 %v598, %v604
    %v609 = vmul.f32 %v607, 0.5
    %v610 = vmul.f32 %v608, 0.5
    %s611 = scalar_lea.vmem [#allocation10], 16
    %612 = vst.msk [vmem:[%s611] sm:$0xff] %vm90, %v609
    %613 = vst.msk [vmem:[%s611 + $0x18] sm:$0xff] %vm90, %v610
    // Predicated region
    $region38: #{bdgcnm_forward.1} parent=1 // pred_check
      _
    $region39: #{bdgcnm_forward.1} parent=1 // pred_check_branch
      %615 = sbr.rel (0) target = $region41
    $region40: #{bdgcnm_forward.1} parent=1 // pred_region
      %s617 = ssub.s32 768, 768
      %618 = vsyncadd [#allocation4], %s617
      %s619 = sshll.u32 [#allocation10], 4
      %s620 = int_to_ptr.vmem [resolvable:$true] %s619
      %625 = dma.vmem_to_hbm [thread:$0]  %s620, 768, %s5, [#allocation4], 128, 128, 8
    $region41: #{bdgcnm_forward.1} parent=1 // pred_fallthru
      _
    // Predicated region
    $region42: #{bdgcnm_forward.1} parent=1 // pred_check
      _
    $region43: #{bdgcnm_forward.1} parent=1 // pred_check_branch
      %627 = sbr.rel (0) target = $region45
    $region44: #{bdgcnm_forward.1} parent=1 // pred_region
      %628 = dma.done [#allocation4], 768
    $region45: #{bdgcnm_forward.1} parent=1 // pred_fallthru
      _
    %629 = vsyncpa [#allocation3], 1
    %630 = vsyncpa [#allocation6], 1
    %631 = vsyncpa [#allocation9], 1
    %632 = vsyncpa [#allocation4], 1

</llo_original>
